<compile_context>
chip_gen: v6e
topology: v6e:2x2x1
jax: 0.10.0
libtpu: 0.0.40
codegen_flags: <defaults>
</compile_context>

<pallas_src>
import jax
import jax.numpy as jnp
from jax.experimental import pallas as pl
from jax.experimental.pallas import tpu as pltpu

B, C_IN, C_OUT, H, W = 2, 4, 4, 16, 16   # in_channels == num_channels (identity skip)
CP = 8                                    # channels padded to one full sublane tile
N = B * H * W                             # flattened batch*spatial -> lane dimension (512)
KP = 128                                  # padded im2col contraction dim (9*CP = 72 live)
EPS = 1e-5
_TAPS = [(dh, dw) for dh in range(3) for dw in range(3)]   # 3x3 taps, t = dh*3 + dw
_G_LANE = 9 * CP                          # lane of the packed slab holding gamma
_B_LANE = 9 * CP + 1                      # lane of the packed slab holding beta

assert N % 128 == 0
# Invariant the halo handling relies on: flat index = b*H*W + h*W + w.  A lane roll by
# (dh-1)*W + (dw-1) lands on the correct neighbour pixel, and the (h,w)-validity mask
# kills every cross-row / cross-image wraparound (a valid (h_src, w_src) implies the
# source lane belongs to the same image).

# TODO(synk): use_1conv=True / strides>1 (projection shortcut + downsample) path not
# implemented; the module's default constructor arguments are the ones exercised here.
# TODO(synk): at real ResNet sizes, add a grid over batch/spatial with
# dimension_semantics=("parallel", ...) (two-pass BN) and re-derive tiling for v7x's
# 64 MiB VMEM; this toy problem is fully VMEM resident on a single TensorCore.


def _residual_kernel(x_ref, wb_ref, mask_ref, out_ref, col_ref):
    """Whole residual block in one invocation (tiny problem, fully VMEM resident).

    x_ref   : (CP, N)     input, channels on sublanes / flattened (b,h,w) on lanes
    wb_ref  : (2, CP, KP) per-conv parameter slab: lanes [0,72) = 3x3 weights laid out as
                          w[c_out, tap*CP + c_in]; lane 72 = gamma, lane 73 = beta; rest 0
    mask_ref: (9*CP, N)   0/1 halo masks, one (CP, N) slab per tap (host precomputed)
    out_ref : (CP, N)
    col_ref : (KP, N)     im2col scratch; rows 72..127 stay zero so the gamma/beta lanes
                          of the weight slab contribute nothing to the matmul
    """
    # One-time zeroing of the padding rows of the im2col scratch.
    col_ref[9 * CP:KP, :] = jnp.zeros((KP - 9 * CP, N), jnp.float32)

    x = x_ref[...]                                                  # (CP, N) f32

    def conv_bn(inp, ci):
        # ---- im2col: stack the 9 shifted+masked taps on sublanes (rows t*CP..t*CP+CP) ----
        for t, (dh, dw) in enumerate(_TAPS):
            rows = slice(t * CP, (t + 1) * CP)
            if dh == 1 and dw == 1:
                col_ref[rows, :] = inp                              # center tap: no shift/mask
            else:
                off = (dh - 1) * W + (dw - 1)                       # source = flat_idx + off
                rolled = pltpu.roll(inp, shift=(-off) % N, axis=1)  # XLU lane roll
                col_ref[rows, :] = rolled * mask_ref[rows, :]       # zero the halo

        # ---- single MXU matmul per conv: (CP, KP) @ (KP, N), f32 accumulate ----
        wb = wb_ref[ci]                                             # (CP, KP)
        y = jnp.dot(wb, col_ref[...], preferred_element_type=jnp.float32)

        # ---- training-mode BatchNorm over (B,H,W) == lane axis, biased variance ----
        stacked = jnp.concatenate([y, y * y], axis=0)               # (2*CP, N)
        sums = jnp.sum(stacked, axis=1, keepdims=True)              # (2*CP, 1) one fused reduce
        inv_n = 1.0 / N
        mu = sums[:CP] * inv_n
        var = sums[CP:] * inv_n - mu * mu                           # single-pass (OK at tol)
        gamma = wb[:, _G_LANE:_G_LANE + 1]                          # (CP, 1)
        beta = wb[:, _B_LANE:_B_LANE + 1]                           # (CP, 1)
        s = gamma * jax.lax.rsqrt(var + EPS)                        # per-channel scale (EUP)
        b = beta - mu * s                                           # per-channel bias
        return y * s + b                                            # 2 full-width VPU ops

    y = jnp.maximum(conv_bn(x, 0), 0.0)                             # relu(bn1(conv1(x)))
    y2 = conv_bn(y, 1)                                              # bn2(conv2(y))
    out_ref[...] = jnp.maximum(y2 + x, 0.0)                         # identity skip + relu


def _pad_c(a, rows, value=0.0):
    """Pad the leading (channel) dim of `a` up to `rows` with `value`."""
    pad = [(0, rows - a.shape[0])] + [(0, 0)] * (a.ndim - 1)
    return jnp.pad(a, pad, constant_values=value)


def _make_tap_masks():
    """(9*CP, N) 0/1 halo masks for the 3x3 taps (static; built once at init)."""
    idx = jnp.arange(N, dtype=jnp.int32)
    hh = (idx // W) % H
    ww = idx % W
    slabs = []
    for dh, dw in _TAPS:
        valid = ((hh + dh - 1 >= 0) & (hh + dh - 1 < H) &
                 (ww + dw - 1 >= 0) & (ww + dw - 1 < W))
        slabs.append(jnp.broadcast_to(valid.astype(jnp.float32)[None, :], (CP, N)))
    return jnp.concatenate(slabs, axis=0)


def prepare_params(params):
    """One-time (init) packing of weights + BN params into the kernel layout.

    Conv biases b1/b2 are intentionally dropped: a per-channel bias immediately followed
    by training-mode BN is cancelled exactly by the mean subtraction.
    """
    def pack_one(w, gamma, beta):
        o, i = w.shape[0], w.shape[1]
        # OIHW -> (o, dh, dw, i) -> (o, 9, i) so lane index = tap*CP + c_in after padding.
        wt = jnp.transpose(w.astype(jnp.float32), (0, 2, 3, 1)).reshape(o, 9, i)
        wt = jnp.pad(wt, ((0, CP - o), (0, 0), (0, CP - i))).reshape(CP, 9 * CP)
        g = _pad_c(gamma.astype(jnp.float32), CP, 1.0)[:, None]
        bt = _pad_c(beta.astype(jnp.float32), CP, 0.0)[:, None]
        tail = jnp.zeros((CP, KP - 9 * CP - 2), jnp.float32)
        return jnp.concatenate([wt, g, bt, tail], axis=1)           # (CP, KP)

    wb = jnp.stack(
        [pack_one(params["w1"], params["gamma1"], params["beta1"]),
         pack_one(params["w2"], params["gamma2"], params["beta2"])], axis=0)  # (2, CP, KP)
    return wb, _make_tap_masks()


@jax.jit
def residual_forward(x_nchw, wb, masks):
    """x_nchw: (B, C_IN, H, W) -> (B, C_OUT, H, W), float32."""
    assert C_IN == C_OUT, "identity skip path requires in_channels == num_channels"
    assert x_nchw.shape == (B, C_IN, H, W)

    # NCHW -> (C, B*H*W), channels zero-padded to CP sublanes.
    xf = _pad_c(
        jnp.transpose(x_nchw.astype(jnp.float32), (1, 0, 2, 3)).reshape(C_IN, N), CP)

    vmem = pl.BlockSpec(memory_space=pltpu.MemorySpace.VMEM)
    out_flat = pl.pallas_call(
        _residual_kernel,
        out_shape=jax.ShapeDtypeStruct((CP, N), jnp.float32),
        in_specs=[vmem, vmem, vmem],
        out_specs=vmem,
        scratch_shapes=[pltpu.VMEM((KP, N), jnp.float32)],
    )(xf, wb, masks)

    # TODO(synk): when chaining residual blocks, keep activations in this (CP, N)
    # lane-dense layout across calls instead of round-tripping through NCHW every call.
    return jnp.transpose(out_flat[:C_OUT].reshape(C_OUT, B, H, W), (1, 0, 2, 3))


def _reference_forward(x, params):
    """Pure-JAX reference (mirrors the PyTorch forward in training mode)."""
    def conv(inp, w, b):
        y = jax.lax.conv_general_dilated(
            inp, w, window_strides=(1, 1), padding=((1, 1), (1, 1)),
            dimension_numbers=("NCHW", "OIHW", "NCHW"),
            precision=jax.lax.Precision.HIGHEST)
        return y + b[None, :, None, None]

    def bn(y, gamma, beta):
        mu = jnp.mean(y, axis=(0, 2, 3), keepdims=True)
        var = jnp.mean((y - mu) ** 2, axis=(0, 2, 3), keepdims=True)
        yhat = (y - mu) * jax.lax.rsqrt(var + EPS)
        return yhat * gamma[None, :, None, None] + beta[None, :, None, None]

    y = jax.nn.relu(bn(conv(x, params["w1"], params["b1"]),
                       params["gamma1"], params["beta1"]))
    y = bn(conv(y, params["w2"], params["b2"]), params["gamma2"], params["beta2"])
    y = y + x
    return jax.nn.relu(y)


if __name__ == "__main__":
    key = jax.random.PRNGKey(0)
    kx, k1, k2, k3, k4, k5, k6, k7, k8 = jax.random.split(key, 9)

    x = jax.random.normal(kx, (B, C_IN, H, W), jnp.float32)
    params = {
        "w1": jax.random.normal(k1, (C_OUT, C_IN, 3, 3), jnp.float32) * 0.1,
        "b1": jax.random.normal(k2, (C_OUT,), jnp.float32) * 0.1,
        "w2": jax.random.normal(k3, (C_OUT, C_OUT, 3, 3), jnp.float32) * 0.1,
        "b2": jax.random.normal(k4, (C_OUT,), jnp.float32) * 0.1,
        "gamma1": 1.0 + 0.1 * jax.random.normal(k5, (C_OUT,), jnp.float32),
        "beta1": 0.1 * jax.random.normal(k6, (C_OUT,), jnp.float32),
        "gamma2": 1.0 + 0.1 * jax.random.normal(k7, (C_OUT,), jnp.float32),
        "beta2": 0.1 * jax.random.normal(k8, (C_OUT,), jnp.float32),
    }

    # Init-time packing (done once, not per forward call).
    wb, masks = prepare_params(params)
    wb, masks = jax.block_until_ready(wb), jax.block_until_ready(masks)

    out = jax.block_until_ready(residual_forward(x, wb, masks))
    ref = jax.block_until_ready(_reference_forward(x, params))

    assert out.shape == (B, C_OUT, H, W), out.shape
    assert jnp.all(jnp.isfinite(out))
    assert jnp.allclose(out, ref, rtol=1e-2, atol=1e-2), float(jnp.max(jnp.abs(out - ref)))
    print("KERNEL_OK")
</pallas_src>

<mosaic_0001>
module attributes {stable_mosaic.version = 11 : i64} {
  func.func @_residual_kernel(%arg0: memref<8x512xf32, #tpu.memory_space<vmem>>, %arg1: memref<2x8x128xf32, #tpu.memory_space<vmem>>, %arg2: memref<72x512xf32, #tpu.memory_space<vmem>>, %arg3: memref<8x512xf32, #tpu.memory_space<vmem>>, %arg4: memref<128x512xf32, #tpu.memory_space<vmem>>) attributes {dimension_semantics = [], scalar_prefetch = 0 : i64, scratch_operands = 1 : i64, tpu.core_type = #tpu.core_type<tc>} {
    %cst = arith.constant 0.000000e+00 : f32
    %0 = vector.broadcast %cst : f32 to vector<56x512xf32>
    %c72 = arith.constant 72 : index
    %c0 = arith.constant 0 : index
    %1 = vector.load %arg4[%c72, %c0] : memref<128x512xf32, #tpu.memory_space<vmem>>, vector<56x512xf32>
    tpu.vector_store %arg4[%c72, %c0], %0 {strides = array<i32>} : memref<128x512xf32, #tpu.memory_space<vmem>>, vector<56x512xf32>,
    %c0_0 = arith.constant 0 : index
    %c0_1 = arith.constant 0 : index
    %2 = vector.load %arg0[%c0_0, %c0_1] : memref<8x512xf32, #tpu.memory_space<vmem>>, vector<8x512xf32>
    %c17_i32 = arith.constant 17 : i32
    %3 = tpu.dynamic_rotate %2 by %c17_i32 dim 1 : vector<8x512xf32>, i32 -> vector<8x512xf32>
    %c0_2 = arith.constant 0 : index
    %c0_3 = arith.constant 0 : index
    %4 = vector.load %arg2[%c0_2, %c0_3] : memref<72x512xf32, #tpu.memory_space<vmem>>, vector<8x512xf32>
    %5 = arith.mulf %3, %4 : vector<8x512xf32>
    %c0_4 = arith.constant 0 : index
    %c0_5 = arith.constant 0 : index
    %6 = vector.load %arg4[%c0_4, %c0_5] : memref<128x512xf32, #tpu.memory_space<vmem>>, vector<8x512xf32>
    tpu.vector_store %arg4[%c0_4, %c0_5], %5 {strides = array<i32>} : memref<128x512xf32, #tpu.memory_space<vmem>>, vector<8x512xf32>,
    %c16_i32 = arith.constant 16 : i32
    %7 = tpu.dynamic_rotate %2 by %c16_i32 dim 1 : vector<8x512xf32>, i32 -> vector<8x512xf32>
    %c8 = arith.constant 8 : index
    %c0_6 = arith.constant 0 : index
    %8 = vector.load %arg2[%c8, %c0_6] : memref<72x512xf32, #tpu.memory_space<vmem>>, vector<8x512xf32>
    %9 = arith.mulf %7, %8 : vector<8x512xf32>
    %c8_7 = arith.constant 8 : index
    %c0_8 = arith.constant 0 : index
    %10 = vector.load %arg4[%c8_7, %c0_8] : memref<128x512xf32, #tpu.memory_space<vmem>>, vector<8x512xf32>
    tpu.vector_store %arg4[%c8_7, %c0_8], %9 {strides = array<i32>} : memref<128x512xf32, #tpu.memory_space<vmem>>, vector<8x512xf32>,
    %c15_i32 = arith.constant 15 : i32
    %11 = tpu.dynamic_rotate %2 by %c15_i32 dim 1 : vector<8x512xf32>, i32 -> vector<8x512xf32>
    %c16 = arith.constant 16 : index
    %c0_9 = arith.constant 0 : index
    %12 = vector.load %arg2[%c16, %c0_9] : memref<72x512xf32, #tpu.memory_space<vmem>>, vector<8x512xf32>
    %13 = arith.mulf %11, %12 : vector<8x512xf32>
    %c16_10 = arith.constant 16 : index
    %c0_11 = arith.constant 0 : index
    %14 = vector.load %arg4[%c16_10, %c0_11] : memref<128x512xf32, #tpu.memory_space<vmem>>, vector<8x512xf32>
    tpu.vector_store %arg4[%c16_10, %c0_11], %13 {strides = array<i32>} : memref<128x512xf32, #tpu.memory_space<vmem>>, vector<8x512xf32>,
    %c1_i32 = arith.constant 1 : i32
    %15 = tpu.dynamic_rotate %2 by %c1_i32 dim 1 : vector<8x512xf32>, i32 -> vector<8x512xf32>
    %c24 = arith.constant 24 : index
    %c0_12 = arith.constant 0 : index
    %16 = vector.load %arg2[%c24, %c0_12] : memref<72x512xf32, #tpu.memory_space<vmem>>, vector<8x512xf32>
    %17 = arith.mulf %15, %16 : vector<8x512xf32>
    %c24_13 = arith.constant 24 : index
    %c0_14 = arith.constant 0 : index
    %18 = vector.load %arg4[%c24_13, %c0_14] : memref<128x512xf32, #tpu.memory_space<vmem>>, vector<8x512xf32>
    tpu.vector_store %arg4[%c24_13, %c0_14], %17 {strides = array<i32>} : memref<128x512xf32, #tpu.memory_space<vmem>>, vector<8x512xf32>,
    %c32 = arith.constant 32 : index
    %c0_15 = arith.constant 0 : index
    %19 = vector.load %arg4[%c32, %c0_15] : memref<128x512xf32, #tpu.memory_space<vmem>>, vector<8x512xf32>
    tpu.vector_store %arg4[%c32, %c0_15], %2 {strides = array<i32>} : memref<128x512xf32, #tpu.memory_space<vmem>>, vector<8x512xf32>,
    %c511_i32 = arith.constant 511 : i32
    %20 = tpu.dynamic_rotate %2 by %c511_i32 dim 1 : vector<8x512xf32>, i32 -> vector<8x512xf32>
    %c40 = arith.constant 40 : index
    %c0_16 = arith.constant 0 : index
    %21 = vector.load %arg2[%c40, %c0_16] : memref<72x512xf32, #tpu.memory_space<vmem>>, vector<8x512xf32>
    %22 = arith.mulf %20, %21 : vector<8x512xf32>
    %c40_17 = arith.constant 40 : index
    %c0_18 = arith.constant 0 : index
    %23 = vector.load %arg4[%c40_17, %c0_18] : memref<128x512xf32, #tpu.memory_space<vmem>>, vector<8x512xf32>
    tpu.vector_store %arg4[%c40_17, %c0_18], %22 {strides = array<i32>} : memref<128x512xf32, #tpu.memory_space<vmem>>, vector<8x512xf32>,
    %c497_i32 = arith.constant 497 : i32
    %24 = tpu.dynamic_rotate %2 by %c497_i32 dim 1 : vector<8x512xf32>, i32 -> vector<8x512xf32>
    %c48 = arith.constant 48 : index
    %c0_19 = arith.constant 0 : index
    %25 = vector.load %arg2[%c48, %c0_19] : memref<72x512xf32, #tpu.memory_space<vmem>>, vector<8x512xf32>
    %26 = arith.mulf %24, %25 : vector<8x512xf32>
    %c48_20 = arith.constant 48 : index
    %c0_21 = arith.constant 0 : index
    %27 = vector.load %arg4[%c48_20, %c0_21] : memref<128x512xf32, #tpu.memory_space<vmem>>, vector<8x512xf32>
    tpu.vector_store %arg4[%c48_20, %c0_21], %26 {strides = array<i32>} : memref<128x512xf32, #tpu.memory_space<vmem>>, vector<8x512xf32>,
    %c496_i32 = arith.constant 496 : i32
    %28 = tpu.dynamic_rotate %2 by %c496_i32 dim 1 : vector<8x512xf32>, i32 -> vector<8x512xf32>
    %c56 = arith.constant 56 : index
    %c0_22 = arith.constant 0 : index
    %29 = vector.load %arg2[%c56, %c0_22] : memref<72x512xf32, #tpu.memory_space<vmem>>, vector<8x512xf32>
    %30 = arith.mulf %28, %29 : vector<8x512xf32>
    %c56_23 = arith.constant 56 : index
    %c0_24 = arith.constant 0 : index
    %31 = vector.load %arg4[%c56_23, %c0_24] : memref<128x512xf32, #tpu.memory_space<vmem>>, vector<8x512xf32>
    tpu.vector_store %arg4[%c56_23, %c0_24], %30 {strides = array<i32>} : memref<128x512xf32, #tpu.memory_space<vmem>>, vector<8x512xf32>,
    %c495_i32 = arith.constant 495 : i32
    %32 = tpu.dynamic_rotate %2 by %c495_i32 dim 1 : vector<8x512xf32>, i32 -> vector<8x512xf32>
    %c64 = arith.constant 64 : index
    %c0_25 = arith.constant 0 : index
    %33 = vector.load %arg2[%c64, %c0_25] : memref<72x512xf32, #tpu.memory_space<vmem>>, vector<8x512xf32>
    %34 = arith.mulf %32, %33 : vector<8x512xf32>
    %c64_26 = arith.constant 64 : index
    %c0_27 = arith.constant 0 : index
    %35 = vector.load %arg4[%c64_26, %c0_27] : memref<128x512xf32, #tpu.memory_space<vmem>>, vector<8x512xf32>
    tpu.vector_store %arg4[%c64_26, %c0_27], %34 {strides = array<i32>} : memref<128x512xf32, #tpu.memory_space<vmem>>, vector<8x512xf32>,
    %c0_28 = arith.constant 0 : index
    %c0_29 = arith.constant 0 : index
    %c0_30 = arith.constant 0 : index
    %36 = vector.load %arg1[%c0_28, %c0_29, %c0_30] : memref<2x8x128xf32, #tpu.memory_space<vmem>>, vector<1x8x128xf32>
    %37 = vector.shape_cast %36 : vector<1x8x128xf32> to vector<8x128xf32>
    %c0_31 = arith.constant 0 : index
    %c0_32 = arith.constant 0 : index
    %38 = vector.load %arg4[%c0_31, %c0_32] : memref<128x512xf32, #tpu.memory_space<vmem>>, vector<128x512xf32>
    %cst_33 = arith.constant dense<0.000000e+00> : vector<8x512xf32>
    %39 = tpu.matmul %37, %38, %cst_33 {dimension_numbers = #tpu.dot_dimension_numbers<[1], [0], [0], [1], [0, 0, 1, 1], [], []>} : vector<8x128xf32>, vector<128x512xf32>, vector<8x512xf32> -> vector<8x512xf32>
    %40 = arith.mulf %39, %39 : vector<8x512xf32>
    %41 = tpu.concatenate %39, %40 in 0 : vector<8x512xf32>, vector<8x512xf32> -> vector<16x512xf32>
    %cst_34 = arith.constant dense<0.000000e+00> : vector<16xf32>
    %42 = vector.multi_reduction <add>, %41, %cst_34 [1] : vector<16x512xf32> to vector<16xf32>
    %43 = vector.shape_cast %42 : vector<16xf32> to vector<16x1xf32>
    %44 = vector.extract_strided_slice %43 {offsets = [0, 0], sizes = [8, 1], strides = [1, 1]} : vector<16x1xf32> to vector<8x1xf32>
    %cst_35 = arith.constant 0.001953125 : f32
    %45 = vector.broadcast %cst_35 : f32 to vector<8x1xf32>
    %46 = arith.mulf %44, %45 : vector<8x1xf32>
    %47 = vector.extract_strided_slice %43 {offsets = [8, 0], sizes = [8, 1], strides = [1, 1]} : vector<16x1xf32> to vector<8x1xf32>
    %cst_36 = arith.constant 0.001953125 : f32
    %48 = vector.broadcast %cst_36 : f32 to vector<8x1xf32>
    %49 = arith.mulf %47, %48 : vector<8x1xf32>
    %50 = arith.mulf %46, %46 : vector<8x1xf32>
    %51 = arith.subf %49, %50 : vector<8x1xf32>
    %52 = vector.extract_strided_slice %37 {offsets = [0, 72], sizes = [8, 1], strides = [1, 1]} : vector<8x128xf32> to vector<8x1xf32>
    %53 = vector.extract_strided_slice %37 {offsets = [0, 73], sizes = [8, 1], strides = [1, 1]} : vector<8x128xf32> to vector<8x1xf32>
    %cst_37 = arith.constant 9.99999974E-6 : f32
    %54 = vector.broadcast %cst_37 : f32 to vector<8x1xf32>
    %55 = arith.addf %51, %54 : vector<8x1xf32>
    %56 = math.rsqrt %55 : vector<8x1xf32>
    %57 = arith.mulf %52, %56 : vector<8x1xf32>
    %58 = arith.mulf %46, %57 : vector<8x1xf32>
    %59 = arith.subf %53, %58 : vector<8x1xf32>
    %60 = vector.broadcast %57 : vector<8x1xf32> to vector<8x512xf32>
    %61 = arith.mulf %39, %60 : vector<8x512xf32>
    %62 = vector.broadcast %59 : vector<8x1xf32> to vector<8x512xf32>
    %63 = arith.addf %61, %62 : vector<8x512xf32>
    %cst_38 = arith.constant 0.000000e+00 : f32
    %64 = vector.broadcast %cst_38 : f32 to vector<8x512xf32>
    %65 = arith.maximumf %63, %64 : vector<8x512xf32>
    %c17_i32_39 = arith.constant 17 : i32
    %66 = tpu.dynamic_rotate %65 by %c17_i32_39 dim 1 : vector<8x512xf32>, i32 -> vector<8x512xf32>
    %c0_40 = arith.constant 0 : index
    %c0_41 = arith.constant 0 : index
    %67 = vector.load %arg2[%c0_40, %c0_41] : memref<72x512xf32, #tpu.memory_space<vmem>>, vector<8x512xf32>
    %68 = arith.mulf %66, %67 : vector<8x512xf32>
    %c0_42 = arith.constant 0 : index
    %c0_43 = arith.constant 0 : index
    %69 = vector.load %arg4[%c0_42, %c0_43] : memref<128x512xf32, #tpu.memory_space<vmem>>, vector<8x512xf32>
    tpu.vector_store %arg4[%c0_42, %c0_43], %68 {strides = array<i32>} : memref<128x512xf32, #tpu.memory_space<vmem>>, vector<8x512xf32>,
    %c16_i32_44 = arith.constant 16 : i32
    %70 = tpu.dynamic_rotate %65 by %c16_i32_44 dim 1 : vector<8x512xf32>, i32 -> vector<8x512xf32>
    %c8_45 = arith.constant 8 : index
    %c0_46 = arith.constant 0 : index
    %71 = vector.load %arg2[%c8_45, %c0_46] : memref<72x512xf32, #tpu.memory_space<vmem>>, vector<8x512xf32>
    %72 = arith.mulf %70, %71 : vector<8x512xf32>
    %c8_47 = arith.constant 8 : index
    %c0_48 = arith.constant 0 : index
    %73 = vector.load %arg4[%c8_47, %c0_48] : memref<128x512xf32, #tpu.memory_space<vmem>>, vector<8x512xf32>
    tpu.vector_store %arg4[%c8_47, %c0_48], %72 {strides = array<i32>} : memref<128x512xf32, #tpu.memory_space<vmem>>, vector<8x512xf32>,
    %c15_i32_49 = arith.constant 15 : i32
    %74 = tpu.dynamic_rotate %65 by %c15_i32_49 dim 1 : vector<8x512xf32>, i32 -> vector<8x512xf32>
    %c16_50 = arith.constant 16 : index
    %c0_51 = arith.constant 0 : index
    %75 = vector.load %arg2[%c16_50, %c0_51] : memref<72x512xf32, #tpu.memory_space<vmem>>, vector<8x512xf32>
    %76 = arith.mulf %74, %75 : vector<8x512xf32>
    %c16_52 = arith.constant 16 : index
    %c0_53 = arith.constant 0 : index
    %77 = vector.load %arg4[%c16_52, %c0_53] : memref<128x512xf32, #tpu.memory_space<vmem>>, vector<8x512xf32>
    tpu.vector_store %arg4[%c16_52, %c0_53], %76 {strides = array<i32>} : memref<128x512xf32, #tpu.memory_space<vmem>>, vector<8x512xf32>,
    %c1_i32_54 = arith.constant 1 : i32
    %78 = tpu.dynamic_rotate %65 by %c1_i32_54 dim 1 : vector<8x512xf32>, i32 -> vector<8x512xf32>
    %c24_55 = arith.constant 24 : index
    %c0_56 = arith.constant 0 : index
    %79 = vector.load %arg2[%c24_55, %c0_56] : memref<72x512xf32, #tpu.memory_space<vmem>>, vector<8x512xf32>
    %80 = arith.mulf %78, %79 : vector<8x512xf32>
    %c24_57 = arith.constant 24 : index
    %c0_58 = arith.constant 0 : index
    %81 = vector.load %arg4[%c24_57, %c0_58] : memref<128x512xf32, #tpu.memory_space<vmem>>, vector<8x512xf32>
    tpu.vector_store %arg4[%c24_57, %c0_58], %80 {strides = array<i32>} : memref<128x512xf32, #tpu.memory_space<vmem>>, vector<8x512xf32>,
    %c32_59 = arith.constant 32 : index
    %c0_60 = arith.constant 0 : index
    %82 = vector.load %arg4[%c32_59, %c0_60] : memref<128x512xf32, #tpu.memory_space<vmem>>, vector<8x512xf32>
    tpu.vector_store %arg4[%c32_59, %c0_60], %65 {strides = array<i32>} : memref<128x512xf32, #tpu.memory_space<vmem>>, vector<8x512xf32>,
    %c511_i32_61 = arith.constant 511 : i32
    %83 = tpu.dynamic_rotate %65 by %c511_i32_61 dim 1 : vector<8x512xf32>, i32 -> vector<8x512xf32>
    %c40_62 = arith.constant 40 : index
    %c0_63 = arith.constant 0 : index
    %84 = vector.load %arg2[%c40_62, %c0_63] : memref<72x512xf32, #tpu.memory_space<vmem>>, vector<8x512xf32>
    %85 = arith.mulf %83, %84 : vector<8x512xf32>
    %c40_64 = arith.constant 40 : index
    %c0_65 = arith.constant 0 : index
    %86 = vector.load %arg4[%c40_64, %c0_65] : memref<128x512xf32, #tpu.memory_space<vmem>>, vector<8x512xf32>
    tpu.vector_store %arg4[%c40_64, %c0_65], %85 {strides = array<i32>} : memref<128x512xf32, #tpu.memory_space<vmem>>, vector<8x512xf32>,
    %c497_i32_66 = arith.constant 497 : i32
    %87 = tpu.dynamic_rotate %65 by %c497_i32_66 dim 1 : vector<8x512xf32>, i32 -> vector<8x512xf32>
    %c48_67 = arith.constant 48 : index
    %c0_68 = arith.constant 0 : index
    %88 = vector.load %arg2[%c48_67, %c0_68] : memref<72x512xf32, #tpu.memory_space<vmem>>, vector<8x512xf32>
    %89 = arith.mulf %87, %88 : vector<8x512xf32>
    %c48_69 = arith.constant 48 : index
    %c0_70 = arith.constant 0 : index
    %90 = vector.load %arg4[%c48_69, %c0_70] : memref<128x512xf32, #tpu.memory_space<vmem>>, vector<8x512xf32>
    tpu.vector_store %arg4[%c48_69, %c0_70], %89 {strides = array<i32>} : memref<128x512xf32, #tpu.memory_space<vmem>>, vector<8x512xf32>,
    %c496_i32_71 = arith.constant 496 : i32
    %91 = tpu.dynamic_rotate %65 by %c496_i32_71 dim 1 : vector<8x512xf32>, i32 -> vector<8x512xf32>
    %c56_72 = arith.constant 56 : index
    %c0_73 = arith.constant 0 : index
    %92 = vector.load %arg2[%c56_72, %c0_73] : memref<72x512xf32, #tpu.memory_space<vmem>>, vector<8x512xf32>
    %93 = arith.mulf %91, %92 : vector<8x512xf32>
    %c56_74 = arith.constant 56 : index
    %c0_75 = arith.constant 0 : index
    %94 = vector.load %arg4[%c56_74, %c0_75] : memref<128x512xf32, #tpu.memory_space<vmem>>, vector<8x512xf32>
    tpu.vector_store %arg4[%c56_74, %c0_75], %93 {strides = array<i32>} : memref<128x512xf32, #tpu.memory_space<vmem>>, vector<8x512xf32>,
    %c495_i32_76 = arith.constant 495 : i32
    %95 = tpu.dynamic_rotate %65 by %c495_i32_76 dim 1 : vector<8x512xf32>, i32 -> vector<8x512xf32>
    %c64_77 = arith.constant 64 : index
    %c0_78 = arith.constant 0 : index
    %96 = vector.load %arg2[%c64_77, %c0_78] : memref<72x512xf32, #tpu.memory_space<vmem>>, vector<8x512xf32>
    %97 = arith.mulf %95, %96 : vector<8x512xf32>
    %c64_79 = arith.constant 64 : index
    %c0_80 = arith.constant 0 : index
    %98 = vector.load %arg4[%c64_79, %c0_80] : memref<128x512xf32, #tpu.memory_space<vmem>>, vector<8x512xf32>
    tpu.vector_store %arg4[%c64_79, %c0_80], %97 {strides = array<i32>} : memref<128x512xf32, #tpu.memory_space<vmem>>, vector<8x512xf32>,
    %c1 = arith.constant 1 : index
    %c0_81 = arith.constant 0 : index
    %c0_82 = arith.constant 0 : index
    %99 = vector.load %arg1[%c1, %c0_81, %c0_82] : memref<2x8x128xf32, #tpu.memory_space<vmem>>, vector<1x8x128xf32>
    %100 = vector.shape_cast %99 : vector<1x8x128xf32> to vector<8x128xf32>
    %c0_83 = arith.constant 0 : index
    %c0_84 = arith.constant 0 : index
    %101 = vector.load %arg4[%c0_83, %c0_84] : memref<128x512xf32, #tpu.memory_space<vmem>>, vector<128x512xf32>
    %cst_85 = arith.constant dense<0.000000e+00> : vector<8x512xf32>
    %102 = tpu.matmul %100, %101, %cst_85 {dimension_numbers = #tpu.dot_dimension_numbers<[1], [0], [0], [1], [0, 0, 1, 1], [], []>} : vector<8x128xf32>, vector<128x512xf32>, vector<8x512xf32> -> vector<8x512xf32>
    %103 = arith.mulf %102, %102 : vector<8x512xf32>
    %104 = tpu.concatenate %102, %103 in 0 : vector<8x512xf32>, vector<8x512xf32> -> vector<16x512xf32>
    %cst_86 = arith.constant dense<0.000000e+00> : vector<16xf32>
    %105 = vector.multi_reduction <add>, %104, %cst_86 [1] : vector<16x512xf32> to vector<16xf32>
    %106 = vector.shape_cast %105 : vector<16xf32> to vector<16x1xf32>
    %107 = vector.extract_strided_slice %106 {offsets = [0, 0], sizes = [8, 1], strides = [1, 1]} : vector<16x1xf32> to vector<8x1xf32>
    %cst_87 = arith.constant 0.001953125 : f32
    %108 = vector.broadcast %cst_87 : f32 to vector<8x1xf32>
    %109 = arith.mulf %107, %108 : vector<8x1xf32>
    %110 = vector.extract_strided_slice %106 {offsets = [8, 0], sizes = [8, 1], strides = [1, 1]} : vector<16x1xf32> to vector<8x1xf32>
    %cst_88 = arith.constant 0.001953125 : f32
    %111 = vector.broadcast %cst_88 : f32 to vector<8x1xf32>
    %112 = arith.mulf %110, %111 : vector<8x1xf32>
    %113 = arith.mulf %109, %109 : vector<8x1xf32>
    %114 = arith.subf %112, %113 : vector<8x1xf32>
    %115 = vector.extract_strided_slice %100 {offsets = [0, 72], sizes = [8, 1], strides = [1, 1]} : vector<8x128xf32> to vector<8x1xf32>
    %116 = vector.extract_strided_slice %100 {offsets = [0, 73], sizes = [8, 1], strides = [1, 1]} : vector<8x128xf32> to vector<8x1xf32>
    %cst_89 = arith.constant 9.99999974E-6 : f32
    %117 = vector.broadcast %cst_89 : f32 to vector<8x1xf32>
    %118 = arith.addf %114, %117 : vector<8x1xf32>
    %119 = math.rsqrt %118 : vector<8x1xf32>
    %120 = arith.mulf %115, %119 : vector<8x1xf32>
    %121 = arith.mulf %109, %120 : vector<8x1xf32>
    %122 = arith.subf %116, %121 : vector<8x1xf32>
    %123 = vector.broadcast %120 : vector<8x1xf32> to vector<8x512xf32>
    %124 = arith.mulf %102, %123 : vector<8x512xf32>
    %125 = vector.broadcast %122 : vector<8x1xf32> to vector<8x512xf32>
    %126 = arith.addf %124, %125 : vector<8x512xf32>
    %127 = arith.addf %126, %2 : vector<8x512xf32>
    %cst_90 = arith.constant 0.000000e+00 : f32
    %128 = vector.broadcast %cst_90 : f32 to vector<8x512xf32>
    %129 = arith.maximumf %127, %128 : vector<8x512xf32>
    %c0_91 = arith.constant 0 : index
    %c0_92 = arith.constant 0 : index
    %130 = vector.load %arg3[%c0_91, %c0_92] : memref<8x512xf32, #tpu.memory_space<vmem>>, vector<8x512xf32>
    tpu.vector_store %arg3[%c0_91, %c0_92], %129 {strides = array<i32>} : memref<8x512xf32, #tpu.memory_space<vmem>>, vector<8x512xf32>,
    return
  }
}

</mosaic_0001>

<llo_original>
// kernel: residual_forward.1
$region0: #{residual_forward.1}
  #allocation0 [shape = 'u32[]', space=smem, size = 0x4, offset = 0x4, fixed_abs, tag = 'smem constant byte address 0x4 - core index']
  #allocation1 [shape = 'u32[144,128]{1,0:T(1,128)}', space=vmem, size = 0x12000, scoped, tag = 'internal scratch']
  #allocation2 [shape = 'f32[128,512]{1,0:T(8,128)}', space=vmem, size = 0x40000, scoped, tag = 'scratch operand']
  %s0 = inlined_call_operand.vmem [shape: f32[8,512], index: 0, kind: input, shape index: {}]
  %s1 = inlined_call_operand.vmem [shape: f32[2,8,128], index: 1, kind: input, shape index: {}]
  %s2 = inlined_call_operand.vmem [shape: f32[72,512], index: 2, kind: input, shape index: {}]
  %s3 = inlined_call_operand.vmem [shape: f32[8,512], index: 3, kind: output, shape index: {}]
  %s4 = sld [smem:[#allocation0]]
  $region22: #{residual_forward.1} parent=0
    _
  %s6 = ssub.s32 1, %s4
  %s7 = scalar_select 0, %s6, %s4
  // Predicated region
  $region2: #{residual_forward.1} parent=0 // pred_check
    _
  $region3: #{residual_forward.1} parent=0 // pred_check_branch
    %9 = sbr.rel (0) target = $region5
  $region4: #{residual_forward.1} parent=0 // pred_region
    _
  $region5: #{residual_forward.1} parent=0 // pred_fallthru
    _
  // Predicated region
  $region6: #{residual_forward.1} parent=0 // pred_check
    _
  $region7: #{residual_forward.1} parent=0 // pred_check_branch
    %11 = sbr.rel (0) target = $region9
  $region8: #{residual_forward.1} parent=0 // pred_region
    _
  $region9: #{residual_forward.1} parent=0 // pred_fallthru
    _
  // Predicated region
  $region10: #{residual_forward.1} parent=0 // pred_check
    _
  $region11: #{residual_forward.1} parent=0 // pred_check_branch
    %13 = sbr.rel (0) target = $region13
  $region12: #{residual_forward.1} parent=0 // pred_region
    _
  $region13: #{residual_forward.1} parent=0 // pred_fallthru
    _
  %14 = vst [vmem:[#allocation2 + $0x120] sm:$0xff] 0.0
  %15 = vst [vmem:[#allocation2 + $0x128] sm:$0xff] 0.0
  %16 = vst [vmem:[#allocation2 + $0x130] sm:$0xff] 0.0
  %17 = vst [vmem:[#allocation2 + $0x138] sm:$0xff] 0.0
  %18 = vst [vmem:[#allocation2 + $0x140] sm:$0xff] 0.0
  %19 = vst [vmem:[#allocation2 + $0x148] sm:$0xff] 0.0
  %20 = vst [vmem:[#allocation2 + $0x150] sm:$0xff] 0.0
  %21 = vst [vmem:[#allocation2 + $0x158] sm:$0xff] 0.0
  %22 = vst [vmem:[#allocation2 + $0x160] sm:$0xff] 0.0
  %23 = vst [vmem:[#allocation2 + $0x168] sm:$0xff] 0.0
  %24 = vst [vmem:[#allocation2 + $0x170] sm:$0xff] 0.0
  %25 = vst [vmem:[#allocation2 + $0x178] sm:$0xff] 0.0
  %26 = vst [vmem:[#allocation2 + $0x180] sm:$0xff] 0.0
  %27 = vst [vmem:[#allocation2 + $0x188] sm:$0xff] 0.0
  %28 = vst [vmem:[#allocation2 + $0x190] sm:$0xff] 0.0
  %29 = vst [vmem:[#allocation2 + $0x198] sm:$0xff] 0.0
  %30 = vst [vmem:[#allocation2 + $0x1a0] sm:$0xff] 0.0
  %31 = vst [vmem:[#allocation2 + $0x1a8] sm:$0xff] 0.0
  %32 = vst [vmem:[#allocation2 + $0x1b0] sm:$0xff] 0.0
  %33 = vst [vmem:[#allocation2 + $0x1b8] sm:$0xff] 0.0
  %34 = vst [vmem:[#allocation2 + $0x1c0] sm:$0xff] 0.0
  %35 = vst [vmem:[#allocation2 + $0x1c8] sm:$0xff] 0.0
  %36 = vst [vmem:[#allocation2 + $0x1d0] sm:$0xff] 0.0
  %37 = vst [vmem:[#allocation2 + $0x1d8] sm:$0xff] 0.0
  %38 = vst [vmem:[#allocation2 + $0x1e0] sm:$0xff] 0.0
  %39 = vst [vmem:[#allocation2 + $0x1e8] sm:$0xff] 0.0
  %40 = vst [vmem:[#allocation2 + $0x1f0] sm:$0xff] 0.0
  %41 = vst [vmem:[#allocation2 + $0x1f8] sm:$0xff] 0.0
  %v42 = vld [vmem:[%s0] sm:$0xff]
  %v43 = vld [vmem:[%s0 + $0x8] sm:$0xff]
  %v44 = vld [vmem:[%s0 + $0x10] sm:$0xff]
  %v45 = vld [vmem:[%s0 + $0x18] sm:$0xff]
  %46 = vrot.lane.b32.xlu0 %v42, 17
  %v47 = vpop.permute.xlu0 %46
  %48 = vrot.lane.b32.xlu0 %v43, 17
  %v49 = vpop.permute.xlu0 %48
  %50 = vrot.lane.b32.xlu0 %v44, 17
  %v51 = vpop.permute.xlu0 %50
  %52 = vrot.lane.b32.xlu0 %v45, 17
  %v53 = vpop.permute.xlu0 %52
  %v54 = vlaneseq
  %v55 = vand.u32 %v54, 127
  %vm56 = vcmp.lt.s32.totalorder %v55, 17
  %v57 = vsel %vm56, %v51, %v53
  %v58 = vsel %vm56, %v49, %v51
  %v59 = vsel %vm56, %v47, %v49
  %v60 = vsel %vm56, %v53, %v47
  %v61 = vld [vmem:[%s2] sm:$0xff]
  %v62 = vld [vmem:[%s2 + $0x8] sm:$0xff]
  %v63 = vld [vmem:[%s2 + $0x10] sm:$0xff]
  %v64 = vld [vmem:[%s2 + $0x18] sm:$0xff]
  %v65 = vmul.f32 %v60, %v61
  %v66 = vmul.f32 %v59, %v62
  %v67 = vmul.f32 %v58, %v63
  %v68 = vmul.f32 %v57, %v64
  %69 = vst [vmem:[#allocation2] sm:$0xff] %v65
  %70 = vst [vmem:[#allocation2 + $0x8] sm:$0xff] %v66
  %71 = vst [vmem:[#allocation2 + $0x10] sm:$0xff] %v67
  %72 = vst [vmem:[#allocation2 + $0x18] sm:$0xff] %v68
  %73 = vrot.lane.b32.xlu0 %v42, 16
  %v74 = vpop.permute.xlu0 %73
  %75 = vrot.lane.b32.xlu0 %v43, 16
  %v76 = vpop.permute.xlu0 %75
  %77 = vrot.lane.b32.xlu0 %v44, 16
  %v78 = vpop.permute.xlu0 %77
  %79 = vrot.lane.b32.xlu0 %v45, 16
  %v80 = vpop.permute.xlu0 %79
  %vm81 = vcmp.lt.s32.totalorder %v55, 16
  %v82 = vsel %vm81, %v78, %v80
  %v83 = vsel %vm81, %v76, %v78
  %v84 = vsel %vm81, %v74, %v76
  %v85 = vsel %vm81, %v80, %v74
  %v86 = vld [vmem:[%s2 + $0x20] sm:$0xff]
  %v87 = vld [vmem:[%s2 + $0x28] sm:$0xff]
  %v88 = vld [vmem:[%s2 + $0x30] sm:$0xff]
  %v89 = vld [vmem:[%s2 + $0x38] sm:$0xff]
  %v90 = vmul.f32 %v85, %v86
  %v91 = vmul.f32 %v84, %v87
  %v92 = vmul.f32 %v83, %v88
  %v93 = vmul.f32 %v82, %v89
  %94 = vst [vmem:[#allocation2 + $0x20] sm:$0xff] %v90
  %95 = vst [vmem:[#allocation2 + $0x28] sm:$0xff] %v91
  %96 = vst [vmem:[#allocation2 + $0x30] sm:$0xff] %v92
  %97 = vst [vmem:[#allocation2 + $0x38] sm:$0xff] %v93
  %98 = vrot.lane.b32.xlu0 %v42, 15
  %v99 = vpop.permute.xlu0 %98
  %100 = vrot.lane.b32.xlu0 %v43, 15
  %v101 = vpop.permute.xlu0 %100
  %102 = vrot.lane.b32.xlu0 %v44, 15
  %v103 = vpop.permute.xlu0 %102
  %104 = vrot.lane.b32.xlu0 %v45, 15
  %v105 = vpop.permute.xlu0 %104
  %vm106 = vcmp.lt.s32.totalorder %v55, 15
  %v107 = vsel %vm106, %v103, %v105
  %v108 = vsel %vm106, %v101, %v103
  %v109 = vsel %vm106, %v99, %v101
  %v110 = vsel %vm106, %v105, %v99
  %v111 = vld [vmem:[%s2 + $0x40] sm:$0xff]
  %v112 = vld [vmem:[%s2 + $0x48] sm:$0xff]
  %v113 = vld [vmem:[%s2 + $0x50] sm:$0xff]
  %v114 = vld [vmem:[%s2 + $0x58] sm:$0xff]
  %v115 = vmul.f32 %v110, %v111
  %v116 = vmul.f32 %v109, %v112
  %v117 = vmul.f32 %v108, %v113
  %v118 = vmul.f32 %v107, %v114
  %119 = vst [vmem:[#allocation2 + $0x40] sm:$0xff] %v115
  %120 = vst [vmem:[#allocation2 + $0x48] sm:$0xff] %v116
  %121 = vst [vmem:[#allocation2 + $0x50] sm:$0xff] %v117
  %122 = vst [vmem:[#allocation2 + $0x58] sm:$0xff] %v118
  %123 = vrot.lane.b32.xlu0 %v42, 1
  %v124 = vpop.permute.xlu0 %123
  %125 = vrot.lane.b32.xlu0 %v43, 1
  %v126 = vpop.permute.xlu0 %125
  %127 = vrot.lane.b32.xlu0 %v44, 1
  %v128 = vpop.permute.xlu0 %127
  %129 = vrot.lane.b32.xlu0 %v45, 1
  %v130 = vpop.permute.xlu0 %129
  %vm131 = vcmp.lt.s32.totalorder %v55, 1
  %v132 = vsel %vm131, %v128, %v130
  %v133 = vsel %vm131, %v126, %v128
  %v134 = vsel %vm131, %v124, %v126
  %v135 = vsel %vm131, %v130, %v124
  %v136 = vld [vmem:[%s2 + $0x60] sm:$0xff]
  %v137 = vld [vmem:[%s2 + $0x68] sm:$0xff]
  %v138 = vld [vmem:[%s2 + $0x70] sm:$0xff]
  %v139 = vld [vmem:[%s2 + $0x78] sm:$0xff]
  %v140 = vmul.f32 %v135, %v136
  %v141 = vmul.f32 %v134, %v137
  %v142 = vmul.f32 %v133, %v138
  %v143 = vmul.f32 %v132, %v139
  %144 = vst [vmem:[#allocation2 + $0x60] sm:$0xff] %v140
  %145 = vst [vmem:[#allocation2 + $0x68] sm:$0xff] %v141
  %146 = vst [vmem:[#allocation2 + $0x70] sm:$0xff] %v142
  %147 = vst [vmem:[#allocation2 + $0x78] sm:$0xff] %v143
  %148 = vst [vmem:[#allocation2 + $0x80] sm:$0xff] %v42
  %149 = vst [vmem:[#allocation2 + $0x88] sm:$0xff] %v43
  %150 = vst [vmem:[#allocation2 + $0x90] sm:$0xff] %v44
  %151 = vst [vmem:[#allocation2 + $0x98] sm:$0xff] %v45
  %152 = vrot.lane.b32.xlu0 %v42, 127
  %v153 = vpop.permute.xlu0 %152
  %154 = vrot.lane.b32.xlu0 %v43, 127
  %v155 = vpop.permute.xlu0 %154
  %156 = vrot.lane.b32.xlu0 %v44, 127
  %v157 = vpop.permute.xlu0 %156
  %158 = vrot.lane.b32.xlu0 %v45, 127
  %v159 = vpop.permute.xlu0 %158
  %vm160 = vcmp.lt.s32.totalorder %v55, 127
  %v161 = vsel %vm160, %v157, %v159
  %v162 = vsel %vm160, %v155, %v157
  %v163 = vsel %vm160, %v153, %v155
  %v164 = vsel %vm160, %v159, %v153
  %v165 = vld [vmem:[%s2 + $0xa0] sm:$0xff]
  %v166 = vld [vmem:[%s2 + $0xa8] sm:$0xff]
  %v167 = vld [vmem:[%s2 + $0xb0] sm:$0xff]
  %v168 = vld [vmem:[%s2 + $0xb8] sm:$0xff]
  %v169 = vmul.f32 %v163, %v165
  %v170 = vmul.f32 %v162, %v166
  %v171 = vmul.f32 %v161, %v167
  %v172 = vmul.f32 %v164, %v168
  %173 = vst [vmem:[#allocation2 + $0xa0] sm:$0xff] %v169
  %174 = vst [vmem:[#allocation2 + $0xa8] sm:$0xff] %v170
  %175 = vst [vmem:[#allocation2 + $0xb0] sm:$0xff] %v171
  %176 = vst [vmem:[#allocation2 + $0xb8] sm:$0xff] %v172
  %177 = vrot.lane.b32.xlu0 %v42, 113
  %v178 = vpop.permute.xlu0 %177
  %179 = vrot.lane.b32.xlu0 %v43, 113
  %v180 = vpop.permute.xlu0 %179
  %181 = vrot.lane.b32.xlu0 %v44, 113
  %v182 = vpop.permute.xlu0 %181
  %183 = vrot.lane.b32.xlu0 %v45, 113
  %v184 = vpop.permute.xlu0 %183
  %vm185 = vcmp.lt.s32.totalorder %v55, 113
  %v186 = vsel %vm185, %v182, %v184
  %v187 = vsel %vm185, %v180, %v182
  %v188 = vsel %vm185, %v178, %v180
  %v189 = vsel %vm185, %v184, %v178
  %v190 = vld [vmem:[%s2 + $0xc0] sm:$0xff]
  %v191 = vld [vmem:[%s2 + $0xc8] sm:$0xff]
  %v192 = vld [vmem:[%s2 + $0xd0] sm:$0xff]
  %v193 = vld [vmem:[%s2 + $0xd8] sm:$0xff]
  %v194 = vmul.f32 %v188, %v190
  %v195 = vmul.f32 %v187, %v191
  %v196 = vmul.f32 %v186, %v192
  %v197 = vmul.f32 %v189, %v193
  %198 = vst [vmem:[#allocation2 + $0xc0] sm:$0xff] %v194
  %199 = vst [vmem:[#allocation2 + $0xc8] sm:$0xff] %v195
  %200 = vst [vmem:[#allocation2 + $0xd0] sm:$0xff] %v196
  %201 = vst [vmem:[#allocation2 + $0xd8] sm:$0xff] %v197
  %202 = vrot.lane.b32.xlu0 %v42, 112
  %v203 = vpop.permute.xlu0 %202
  %204 = vrot.lane.b32.xlu0 %v43, 112
  %v205 = vpop.permute.xlu0 %204
  %206 = vrot.lane.b32.xlu0 %v44, 112
  %v207 = vpop.permute.xlu0 %206
  %208 = vrot.lane.b32.xlu0 %v45, 112
  %v209 = vpop.permute.xlu0 %208
  %vm210 = vcmp.lt.s32.totalorder %v55, 112
  %v211 = vsel %vm210, %v207, %v209
  %v212 = vsel %vm210, %v205, %v207
  %v213 = vsel %vm210, %v203, %v205
  %v214 = vsel %vm210, %v209, %v203
  %v215 = vld [vmem:[%s2 + $0xe0] sm:$0xff]
  %v216 = vld [vmem:[%s2 + $0xe8] sm:$0xff]
  %v217 = vld [vmem:[%s2 + $0xf0] sm:$0xff]
  %v218 = vld [vmem:[%s2 + $0xf8] sm:$0xff]
  %v219 = vmul.f32 %v213, %v215
  %v220 = vmul.f32 %v212, %v216
  %v221 = vmul.f32 %v211, %v217
  %v222 = vmul.f32 %v214, %v218
  %223 = vst [vmem:[#allocation2 + $0xe0] sm:$0xff] %v219
  %224 = vst [vmem:[#allocation2 + $0xe8] sm:$0xff] %v220
  %225 = vst [vmem:[#allocation2 + $0xf0] sm:$0xff] %v221
  %226 = vst [vmem:[#allocation2 + $0xf8] sm:$0xff] %v222
  %227 = vrot.lane.b32.xlu0 %v42, 111
  %v228 = vpop.permute.xlu0 %227
  %229 = vrot.lane.b32.xlu0 %v43, 111
  %v230 = vpop.permute.xlu0 %229
  %231 = vrot.lane.b32.xlu0 %v44, 111
  %v232 = vpop.permute.xlu0 %231
  %233 = vrot.lane.b32.xlu0 %v45, 111
  %v234 = vpop.permute.xlu0 %233
  %vm235 = vcmp.lt.s32.totalorder %v55, 111
  %v236 = vsel %vm235, %v232, %v234
  %v237 = vsel %vm235, %v230, %v232
  %v238 = vsel %vm235, %v228, %v230
  %v239 = vsel %vm235, %v234, %v228
  %v240 = vld [vmem:[%s2 + $0x100] sm:$0xff]
  %v241 = vld [vmem:[%s2 + $0x108] sm:$0xff]
  %v242 = vld [vmem:[%s2 + $0x110] sm:$0xff]
  %v243 = vld [vmem:[%s2 + $0x118] sm:$0xff]
  %v244 = vmul.f32 %v238, %v240
  %v245 = vmul.f32 %v237, %v241
  %v246 = vmul.f32 %v236, %v242
  %v247 = vmul.f32 %v239, %v243
  %248 = vst [vmem:[#allocation2 + $0x100] sm:$0xff] %v244
  %249 = vst [vmem:[#allocation2 + $0x108] sm:$0xff] %v245
  %250 = vst [vmem:[#allocation2 + $0x110] sm:$0xff] %v246
  %251 = vst [vmem:[#allocation2 + $0x118] sm:$0xff] %v247
  %v252 = vld [vmem:[%s1] sm:$0xff]
  %v253 = vld [vmem:[#allocation2] sm:$0xff]
  %v254 = vld [vmem:[#allocation2 + $0x8] sm:$0xff]
  %v255 = vld [vmem:[#allocation2 + $0x10] sm:$0xff]
  %v256 = vld [vmem:[#allocation2 + $0x18] sm:$0xff]
  %v257 = vld [vmem:[#allocation2 + $0x20] sm:$0xff]
  %v258 = vld [vmem:[#allocation2 + $0x28] sm:$0xff]
  %v259 = vld [vmem:[#allocation2 + $0x30] sm:$0xff]
  %v260 = vld [vmem:[#allocation2 + $0x38] sm:$0xff]
  %v261 = vld [vmem:[#allocation2 + $0x40] sm:$0xff]
  %v262 = vld [vmem:[#allocation2 + $0x48] sm:$0xff]
  %v263 = vld [vmem:[#allocation2 + $0x50] sm:$0xff]
  %v264 = vld [vmem:[#allocation2 + $0x58] sm:$0xff]
  %v265 = vld [vmem:[#allocation2 + $0x60] sm:$0xff]
  %v266 = vld [vmem:[#allocation2 + $0x68] sm:$0xff]
  %v267 = vld [vmem:[#allocation2 + $0x70] sm:$0xff]
  %v268 = vld [vmem:[#allocation2 + $0x78] sm:$0xff]
  %v269 = vld [vmem:[#allocation2 + $0x80] sm:$0xff]
  %v270 = vld [vmem:[#allocation2 + $0x88] sm:$0xff]
  %v271 = vld [vmem:[#allocation2 + $0x90] sm:$0xff]
  %v272 = vld [vmem:[#allocation2 + $0x98] sm:$0xff]
  %v273 = vld [vmem:[#allocation2 + $0xa0] sm:$0xff]
  %v274 = vld [vmem:[#allocation2 + $0xa8] sm:$0xff]
  %v275 = vld [vmem:[#allocation2 + $0xb0] sm:$0xff]
  %v276 = vld [vmem:[#allocation2 + $0xb8] sm:$0xff]
  %v277 = vld [vmem:[#allocation2 + $0xc0] sm:$0xff]
  %v278 = vld [vmem:[#allocation2 + $0xc8] sm:$0xff]
  %v279 = vld [vmem:[#allocation2 + $0xd0] sm:$0xff]
  %v280 = vld [vmem:[#allocation2 + $0xd8] sm:$0xff]
  %v281 = vld [vmem:[#allocation2 + $0xe0] sm:$0xff]
  %v282 = vld [vmem:[#allocation2 + $0xe8] sm:$0xff]
  %v283 = vld [vmem:[#allocation2 + $0xf0] sm:$0xff]
  %v284 = vld [vmem:[#allocation2 + $0xf8] sm:$0xff]
  %v285 = vld [vmem:[#allocation2 + $0x100] sm:$0xff]
  %v286 = vld [vmem:[#allocation2 + $0x108] sm:$0xff]
  %v287 = vld [vmem:[#allocation2 + $0x110] sm:$0xff]
  %v288 = vld [vmem:[#allocation2 + $0x118] sm:$0xff]
  %v289 = vld [vmem:[#allocation2 + $0x120] sm:$0xff]
  %v290 = vld [vmem:[#allocation2 + $0x128] sm:$0xff]
  %v291 = vld [vmem:[#allocation2 + $0x130] sm:$0xff]
  %v292 = vld [vmem:[#allocation2 + $0x138] sm:$0xff]
  %v293 = vld [vmem:[#allocation2 + $0x140] sm:$0xff]
  %v294 = vld [vmem:[#allocation2 + $0x148] sm:$0xff]
  %v295 = vld [vmem:[#allocation2 + $0x150] sm:$0xff]
  %v296 = vld [vmem:[#allocation2 + $0x158] sm:$0xff]
  %v297 = vld [vmem:[#allocation2 + $0x160] sm:$0xff]
  %v298 = vld [vmem:[#allocation2 + $0x168] sm:$0xff]
  %v299 = vld [vmem:[#allocation2 + $0x170] sm:$0xff]
  %v300 = vld [vmem:[#allocation2 + $0x178] sm:$0xff]
  %v301 = vld [vmem:[#allocation2 + $0x180] sm:$0xff]
  %v302 = vld [vmem:[#allocation2 + $0x188] sm:$0xff]
  %v303 = vld [vmem:[#allocation2 + $0x190] sm:$0xff]
  %v304 = vld [vmem:[#allocation2 + $0x198] sm:$0xff]
  %v305 = vld [vmem:[#allocation2 + $0x1a0] sm:$0xff]
  %v306 = vld [vmem:[#allocation2 + $0x1a8] sm:$0xff]
  %v307 = vld [vmem:[#allocation2 + $0x1b0] sm:$0xff]
  %v308 = vld [vmem:[#allocation2 + $0x1b8] sm:$0xff]
  %v309 = vld [vmem:[#allocation2 + $0x1c0] sm:$0xff]
  %v310 = vld [vmem:[#allocation2 + $0x1c8] sm:$0xff]
  %v311 = vld [vmem:[#allocation2 + $0x1d0] sm:$0xff]
  %v312 = vld [vmem:[#allocation2 + $0x1d8] sm:$0xff]
  %v313 = vld [vmem:[#allocation2 + $0x1e0] sm:$0xff]
  %v314 = vld [vmem:[#allocation2 + $0x1e8] sm:$0xff]
  %v315 = vld [vmem:[#allocation2 + $0x1f0] sm:$0xff]
  %v316 = vld [vmem:[#allocation2 + $0x1f8] sm:$0xff]
  %317 = vmatprep.subr.mxu0 %v314
  %318 = vmatpush1.msra.mxu0 %v313
  %319 = vmatprep.subr.mxu0 %v310
  %320 = vmatpush1.msra.mxu0 %v309
  %321 = vmatprep.subr.mxu0 %v306
  %322 = vmatpush1.msra.mxu0 %v305
  %323 = vmatprep.subr.mxu0 %v302
  %324 = vmatpush1.msra.mxu0 %v301
  %325 = vmatprep.subr.mxu0 %v298
  %326 = vmatpush1.msra.mxu0 %v297
  %327 = vmatprep.subr.mxu0 %v294
  %328 = vmatpush1.msra.mxu0 %v293
  %329 = vmatprep.subr.mxu0 %v290
  %330 = vmatpush1.msra.mxu0 %v289
  %331 = vmatprep.subr.mxu0 %v286
  %332 = vmatpush1.msra.mxu0 %v285
  %333 = vmatprep.subr.mxu0 %v282
  %334 = vmatpush1.msra.mxu0 %v281
  %335 = vmatprep.subr.mxu0 %v278
  %336 = vmatpush1.msra.mxu0 %v277
  %337 = vmatprep.subr.mxu0 %v274
  %338 = vmatpush1.msra.mxu0 %v273
  %339 = vmatprep.subr.mxu0 %v270
  %340 = vmatpush1.msra.mxu0 %v269
  %341 = vmatprep.subr.mxu0 %v266
  %342 = vmatpush1.msra.mxu0 %v265
  %343 = vmatprep.subr.mxu0 %v262
  %344 = vmatpush1.msra.mxu0 %v261
  %345 = vmatprep.subr.mxu0 %v258
  %346 = vmatpush1.msra.mxu0 %v257
  %347 = vmatprep.subr.mxu0 %v254
  %348 = vmatpush1.msra.mxu0 %v253
  %349 = vmatprep.subr.mxu0 0.0
  %350 = vmatpush2.msra.mxu0 0.0
  %351 = vmatprep.subr.mxu0 0.0
  %352 = vmatpush2.msra.mxu0 0.0
  %353 = vmatprep.subr.mxu0 0.0
  %354 = vmatpush2.msra.mxu0 0.0
  %355 = vmatprep.subr.mxu0 0.0
  %356 = vmatpush2.msra.mxu0 0.0
  %357 = vmatprep.subr.mxu0 0.0
  %358 = vmatpush2.msra.mxu0 0.0
  %359 = vmatprep.subr.mxu0 0.0
  %360 = vmatpush2.msra.mxu0 0.0
  %361 = vmatprep.subr.mxu0 0.0
  %362 = vmatpush2.msra.mxu0 0.0
  %363 = vmatprep.subr.mxu0 0.0
  %364 = vmatpush2.msra.mxu0 0.0
  %365 = vmatprep.subr.mxu0 0.0
  %366 = vmatpush2.msra.mxu0 0.0
  %367 = vmatprep.subr.mxu0 0.0
  %368 = vmatpush2.msra.mxu0 0.0
  %369 = vmatprep.subr.mxu0 0.0
  %370 = vmatpush2.msra.mxu0 0.0
  %371 = vmatprep.subr.mxu0 0.0
  %372 = vmatpush2.msra.mxu0 0.0
  %373 = vmatprep.subr.mxu0 0.0
  %374 = vmatpush2.msra.mxu0 0.0
  %375 = vmatprep.subr.mxu0 0.0
  %376 = vmatpush2.msra.mxu0 0.0
  %377 = vmatprep.subr.mxu0 0.0
  %378 = vmatpush2.msra.mxu0 0.0
  %379 = vmatprep.subr.mxu0 0.0
  %380 = vmatpush2.msra.mxu0 0.0
  %381 = vmatprep.mubr.f32.mxu0 0.0
  %382 = vmatmul.mubr.f32.gmra.mxu0 %v252
  %v383 = vpop.f32.mrf.mxu0
  %v384 = vadd.f32 0.0, %v383
  %v385 = vpop.f32.mrf.mxu0
  %v386 = vadd.f32 0.0, %v385
  %387 = vdwg.mxu0
  %388 = vmatprep.subr.mxu0 %v316
  %389 = vmatpush1.msra.mxu0 %v315
  %390 = vmatprep.subr.mxu0 %v312
  %391 = vmatpush1.msra.mxu0 %v311
  %392 = vmatprep.subr.mxu0 %v308
  %393 = vmatpush1.msra.mxu0 %v307
  %394 = vmatprep.subr.mxu0 %v304
  %395 = vmatpush1.msra.mxu0 %v303
  %396 = vmatprep.subr.mxu0 %v300
  %397 = vmatpush1.msra.mxu0 %v299
  %398 = vmatprep.subr.mxu0 %v296
  %399 = vmatpush1.msra.mxu0 %v295
  %400 = vmatprep.subr.mxu0 %v292
  %401 = vmatpush1.msra.mxu0 %v291
  %402 = vmatprep.subr.mxu0 %v288
  %403 = vmatpush1.msra.mxu0 %v287
  %404 = vmatprep.subr.mxu0 %v284
  %405 = vmatpush1.msra.mxu0 %v283
  %406 = vmatprep.subr.mxu0 %v280
  %407 = vmatpush1.msra.mxu0 %v279
  %408 = vmatprep.subr.mxu0 %v276
  %409 = vmatpush1.msra.mxu0 %v275
  %410 = vmatprep.subr.mxu0 %v272
  %411 = vmatpush1.msra.mxu0 %v271
  %412 = vmatprep.subr.mxu0 %v268
  %413 = vmatpush1.msra.mxu0 %v267
  %414 = vmatprep.subr.mxu0 %v264
  %415 = vmatpush1.msra.mxu0 %v263
  %416 = vmatprep.subr.mxu0 %v260
  %417 = vmatpush1.msra.mxu0 %v259
  %418 = vmatprep.subr.mxu0 %v256
  %419 = vmatpush1.msra.mxu0 %v255
  %420 = vmatprep.subr.mxu0 0.0
  %421 = vmatpush2.msra.mxu0 0.0
  %422 = vmatprep.subr.mxu0 0.0
  %423 = vmatpush2.msra.mxu0 0.0
  %424 = vmatprep.subr.mxu0 0.0
  %425 = vmatpush2.msra.mxu0 0.0
  %426 = vmatprep.subr.mxu0 0.0
  %427 = vmatpush2.msra.mxu0 0.0
  %428 = vmatprep.subr.mxu0 0.0
  %429 = vmatpush2.msra.mxu0 0.0
  %430 = vmatprep.subr.mxu0 0.0
  %431 = vmatpush2.msra.mxu0 0.0
  %432 = vmatprep.subr.mxu0 0.0
  %433 = vmatpush2.msra.mxu0 0.0
  %434 = vmatprep.subr.mxu0 0.0
  %435 = vmatpush2.msra.mxu0 0.0
  %436 = vmatprep.subr.mxu0 0.0
  %437 = vmatpush2.msra.mxu0 0.0
  %438 = vmatprep.subr.mxu0 0.0
  %439 = vmatpush2.msra.mxu0 0.0
  %440 = vmatprep.subr.mxu0 0.0
  %441 = vmatpush2.msra.mxu0 0.0
  %442 = vmatprep.subr.mxu0 0.0
  %443 = vmatpush2.msra.mxu0 0.0
  %444 = vmatprep.subr.mxu0 0.0
  %445 = vmatpush2.msra.mxu0 0.0
  %446 = vmatprep.subr.mxu0 0.0
  %447 = vmatpush2.msra.mxu0 0.0
  %448 = vmatprep.subr.mxu0 0.0
  %449 = vmatpush2.msra.mxu0 0.0
  %450 = vmatprep.subr.mxu0 0.0
  %451 = vmatpush2.msra.mxu0 0.0
  %452 = vmatprep.mubr.f32.mxu0 0.0
  %453 = vmatmul.mubr.f32.gmra.mxu0 %v252
  %v454 = vpop.f32.mrf.mxu0
  %v455 = vadd.f32 0.0, %v454
  %v456 = vpop.f32.mrf.mxu0
  %v457 = vadd.f32 0.0, %v456
  %458 = vdwg.mxu0
  %v459 = vmul.f32 %v384, %v384
  %v460 = vmul.f32 %v386, %v386
  %v461 = vmul.f32 %v455, %v455
  %v462 = vmul.f32 %v457, %v457
  %v463 = vadd.f32 %v384, %v386
  %v464 = vadd.f32 %v463, %v455
  %v465 = vadd.f32 %v464, %v457
  %466 = vadd.xlane.f32.xlu0 %v465
  %v467 = vpop.xlane.xlu0 %466
  %v468 = vadd.f32 %v459, %v460
  %v469 = vadd.f32 %v468, %v461
  %v470 = vadd.f32 %v469, %v462
  %471 = vadd.xlane.f32.xlu0 %v470
  %v472 = vpop.xlane.xlu0 %471
  %v473 = vmul.f32 %v467, 0.001953125
  %v474 = vmul.f32 %v472, 0.001953125
  %v475 = vmul.f32 %v473, %v473
  %v476 = vsub.f32 %v474, %v475
  %v477 = vadd.f32 %v476, 1e-05
  %v478 = vrsqrt.pop %v477
  %v479 = vmul.f32 %v252, %v478
  %v480 = vmul.f32 %v473, %v479
  %482 = vrot.lane.b32.xlu0 %v480, 1
  %v483 = vpop.permute.xlu0 %482
  %v485 = vsub.f32 %v252, %v483
  %487 = vset.pattern.permute.xlu0 72
  %488 = vperm.xlu0 %487, %v479
  %v489 = vpop.permute.xlu0 %488
  %v491 = vmul.f32 %v384, %v489
  %v492 = vmul.f32 %v386, %v489
  %v493 = vmul.f32 %v455, %v489
  %v494 = vmul.f32 %v457, %v489
  %496 = vset.pattern.permute.xlu0 73
  %497 = vperm.xlu0 %496, %v485
  %v498 = vpop.permute.xlu0 %497
  %v500 = vadd.f32 %v491, %v498
  %v501 = vadd.f32 %v492, %v498
  %v502 = vadd.f32 %v493, %v498
  %v503 = vadd.f32 %v494, %v498
  %v504 = vmax.f32 %v500, 0.0
  %v505 = vmax.f32 %v501, 0.0
  %v506 = vmax.f32 %v502, 0.0
  %v507 = vmax.f32 %v503, 0.0
  %508 = vrot.lane.b32.xlu0 %v504, 17
  %v509 = vpop.permute.xlu0 %508
  %510 = vrot.lane.b32.xlu0 %v505, 17
  %v511 = vpop.permute.xlu0 %510
  %512 = vrot.lane.b32.xlu0 %v506, 17
  %v513 = vpop.permute.xlu0 %512
  %514 = vrot.lane.b32.xlu0 %v507, 17
  %v515 = vpop.permute.xlu0 %514
  %v516 = vsel %vm56, %v513, %v515
  %v517 = vsel %vm56, %v511, %v513
  %v518 = vsel %vm56, %v509, %v511
  %v519 = vsel %vm56, %v515, %v509
  %v520 = vld [vmem:[%s2] sm:$0xff]
  %v521 = vld [vmem:[%s2 + $0x8] sm:$0xff]
  %v522 = vld [vmem:[%s2 + $0x10] sm:$0xff]
  %v523 = vld [vmem:[%s2 + $0x18] sm:$0xff]
  %v524 = vmul.f32 %v519, %v520
  %v525 = vmul.f32 %v518, %v521
  %v526 = vmul.f32 %v517, %v522
  %v527 = vmul.f32 %v516, %v523
  %528 = vst [vmem:[#allocation2] sm:$0xff] %v524
  %529 = vst [vmem:[#allocation2 + $0x8] sm:$0xff] %v525
  %530 = vst [vmem:[#allocation2 + $0x10] sm:$0xff] %v526
  %531 = vst [vmem:[#allocation2 + $0x18] sm:$0xff] %v527
  %532 = vrot.lane.b32.xlu0 %v504, 16
  %v533 = vpop.permute.xlu0 %532
  %534 = vrot.lane.b32.xlu0 %v505, 16
  %v535 = vpop.permute.xlu0 %534
  %536 = vrot.lane.b32.xlu0 %v506, 16
  %v537 = vpop.permute.xlu0 %536
  %538 = vrot.lane.b32.xlu0 %v507, 16
  %v539 = vpop.permute.xlu0 %538
  %v540 = vsel %vm81, %v537, %v539
  %v541 = vsel %vm81, %v535, %v537
  %v542 = vsel %vm81, %v533, %v535
  %v543 = vsel %vm81, %v539, %v533
  %v544 = vld [vmem:[%s2 + $0x20] sm:$0xff]
  %v545 = vld [vmem:[%s2 + $0x28] sm:$0xff]
  %v546 = vld [vmem:[%s2 + $0x30] sm:$0xff]
  %v547 = vld [vmem:[%s2 + $0x38] sm:$0xff]
  %v548 = vmul.f32 %v543, %v544
  %v549 = vmul.f32 %v542, %v545
  %v550 = vmul.f32 %v541, %v546
  %v551 = vmul.f32 %v540, %v547
  %552 = vst [vmem:[#allocation2 + $0x20] sm:$0xff] %v548
  %553 = vst [vmem:[#allocation2 + $0x28] sm:$0xff] %v549
  %554 = vst [vmem:[#allocation2 + $0x30] sm:$0xff] %v550
  %555 = vst [vmem:[#allocation2 + $0x38] sm:$0xff] %v551
  %556 = vrot.lane.b32.xlu0 %v504, 15
  %v557 = vpop.permute.xlu0 %556
  %558 = vrot.lane.b32.xlu0 %v505, 15
  %v559 = vpop.permute.xlu0 %558
  %560 = vrot.lane.b32.xlu0 %v506, 15
  %v561 = vpop.permute.xlu0 %560
  %562 = vrot.lane.b32.xlu0 %v507, 15
  %v563 = vpop.permute.xlu0 %562
  %v564 = vsel %vm106, %v561, %v563
  %v565 = vsel %vm106, %v559, %v561
  %v566 = vsel %vm106, %v557, %v559
  %v567 = vsel %vm106, %v563, %v557
  %v568 = vld [vmem:[%s2 + $0x40] sm:$0xff]
  %v569 = vld [vmem:[%s2 + $0x48] sm:$0xff]
  %v570 = vld [vmem:[%s2 + $0x50] sm:$0xff]
  %v571 = vld [vmem:[%s2 + $0x58] sm:$0xff]
  %v572 = vmul.f32 %v567, %v568
  %v573 = vmul.f32 %v566, %v569
  %v574 = vmul.f32 %v565, %v570
  %v575 = vmul.f32 %v564, %v571
  %576 = vst [vmem:[#allocation2 + $0x40] sm:$0xff] %v572
  %577 = vst [vmem:[#allocation2 + $0x48] sm:$0xff] %v573
  %578 = vst [vmem:[#allocation2 + $0x50] sm:$0xff] %v574
  %579 = vst [vmem:[#allocation2 + $0x58] sm:$0xff] %v575
  %580 = vrot.lane.b32.xlu0 %v504, 1
  %v581 = vpop.permute.xlu0 %580
  %582 = vrot.lane.b32.xlu0 %v505, 1
  %v583 = vpop.permute.xlu0 %582
  %584 = vrot.lane.b32.xlu0 %v506, 1
  %v585 = vpop.permute.xlu0 %584
  %586 = vrot.lane.b32.xlu0 %v507, 1
  %v587 = vpop.permute.xlu0 %586
  %v588 = vsel %vm131, %v585, %v587
  %v589 = vsel %vm131, %v583, %v585
  %v590 = vsel %vm131, %v581, %v583
  %v591 = vsel %vm131, %v587, %v581
  %v592 = vld [vmem:[%s2 + $0x60] sm:$0xff]
  %v593 = vld [vmem:[%s2 + $0x68] sm:$0xff]
  %v594 = vld [vmem:[%s2 + $0x70] sm:$0xff]
  %v595 = vld [vmem:[%s2 + $0x78] sm:$0xff]
  %v596 = vmul.f32 %v591, %v592
  %v597 = vmul.f32 %v590, %v593
  %v598 = vmul.f32 %v589, %v594
  %v599 = vmul.f32 %v588, %v595
  %600 = vst [vmem:[#allocation2 + $0x60] sm:$0xff] %v596
  %601 = vst [vmem:[#allocation2 + $0x68] sm:$0xff] %v597
  %602 = vst [vmem:[#allocation2 + $0x70] sm:$0xff] %v598
  %603 = vst [vmem:[#allocation2 + $0x78] sm:$0xff] %v599
  %604 = vst [vmem:[#allocation2 + $0x80] sm:$0xff] %v504
  %605 = vst [vmem:[#allocation2 + $0x88] sm:$0xff] %v505
  %606 = vst [vmem:[#allocation2 + $0x90] sm:$0xff] %v506
  %607 = vst [vmem:[#allocation2 + $0x98] sm:$0xff] %v507
  %608 = vrot.lane.b32.xlu0 %v504, 127
  %v609 = vpop.permute.xlu0 %608
  %610 = vrot.lane.b32.xlu0 %v505, 127
  %v611 = vpop.permute.xlu0 %610
  %612 = vrot.lane.b32.xlu0 %v506, 127
  %v613 = vpop.permute.xlu0 %612
  %614 = vrot.lane.b32.xlu0 %v507, 127
  %v615 = vpop.permute.xlu0 %614
  %v616 = vsel %vm160, %v613, %v615
  %v617 = vsel %vm160, %v611, %v613
  %v618 = vsel %vm160, %v609, %v611
  %v619 = vsel %vm160, %v615, %v609
  %v620 = vld [vmem:[%s2 + $0xa0] sm:$0xff]
  %v621 = vld [vmem:[%s2 + $0xa8] sm:$0xff]
  %v622 = vld [vmem:[%s2 + $0xb0] sm:$0xff]
  %v623 = vld [vmem:[%s2 + $0xb8] sm:$0xff]
  %v624 = vmul.f32 %v618, %v620
  %v625 = vmul.f32 %v617, %v621
  %v626 = vmul.f32 %v616, %v622
  %v627 = vmul.f32 %v619, %v623
  %628 = vst [vmem:[#allocation2 + $0xa0] sm:$0xff] %v624
  %629 = vst [vmem:[#allocation2 + $0xa8] sm:$0xff] %v625
  %630 = vst [vmem:[#allocation2 + $0xb0] sm:$0xff] %v626
  %631 = vst [vmem:[#allocation2 + $0xb8] sm:$0xff] %v627
  %632 = vrot.lane.b32.xlu0 %v504, 113
  %v633 = vpop.permute.xlu0 %632
  %634 = vrot.lane.b32.xlu0 %v505, 113
  %v635 = vpop.permute.xlu0 %634
  %636 = vrot.lane.b32.xlu0 %v506, 113
  %v637 = vpop.permute.xlu0 %636
  %638 = vrot.lane.b32.xlu0 %v507, 113
  %v639 = vpop.permute.xlu0 %638
  %v640 = vsel %vm185, %v637, %v639
  %v641 = vsel %vm185, %v635, %v637
  %v642 = vsel %vm185, %v633, %v635
  %v643 = vsel %vm185, %v639, %v633
  %v644 = vld [vmem:[%s2 + $0xc0] sm:$0xff]
  %v645 = vld [vmem:[%s2 + $0xc8] sm:$0xff]
  %v646 = vld [vmem:[%s2 + $0xd0] sm:$0xff]
  %v647 = vld [vmem:[%s2 + $0xd8] sm:$0xff]
  %v648 = vmul.f32 %v642, %v644
  %v649 = vmul.f32 %v641, %v645
  %v650 = vmul.f32 %v640, %v646
  %v651 = vmul.f32 %v643, %v647
  %652 = vst [vmem:[#allocation2 + $0xc0] sm:$0xff] %v648
  %653 = vst [vmem:[#allocation2 + $0xc8] sm:$0xff] %v649
  %654 = vst [vmem:[#allocation2 + $0xd0] sm:$0xff] %v650
  %655 = vst [vmem:[#allocation2 + $0xd8] sm:$0xff] %v651
  %656 = vrot.lane.b32.xlu0 %v504, 112
  %v657 = vpop.permute.xlu0 %656
  %658 = vrot.lane.b32.xlu0 %v505, 112
  %v659 = vpop.permute.xlu0 %658
  %660 = vrot.lane.b32.xlu0 %v506, 112
  %v661 = vpop.permute.xlu0 %660
  %662 = vrot.lane.b32.xlu0 %v507, 112
  %v663 = vpop.permute.xlu0 %662
  %v664 = vsel %vm210, %v661, %v663
  %v665 = vsel %vm210, %v659, %v661
  %v666 = vsel %vm210, %v657, %v659
  %v667 = vsel %vm210, %v663, %v657
  %v668 = vld [vmem:[%s2 + $0xe0] sm:$0xff]
  %v669 = vld [vmem:[%s2 + $0xe8] sm:$0xff]
  %v670 = vld [vmem:[%s2 + $0xf0] sm:$0xff]
  %v671 = vld [vmem:[%s2 + $0xf8] sm:$0xff]
  %v672 = vmul.f32 %v666, %v668
  %v673 = vmul.f32 %v665, %v669
  %v674 = vmul.f32 %v664, %v670
  %v675 = vmul.f32 %v667, %v671
  %676 = vst [vmem:[#allocation2 + $0xe0] sm:$0xff] %v672
  %677 = vst [vmem:[#allocation2 + $0xe8] sm:$0xff] %v673
  %678 = vst [vmem:[#allocation2 + $0xf0] sm:$0xff] %v674
  %679 = vst [vmem:[#allocation2 + $0xf8] sm:$0xff] %v675
  %680 = vrot.lane.b32.xlu0 %v504, 111
  %v681 = vpop.permute.xlu0 %680
  %682 = vrot.lane.b32.xlu0 %v505, 111
  %v683 = vpop.permute.xlu0 %682
  %684 = vrot.lane.b32.xlu0 %v506, 111
  %v685 = vpop.permute.xlu0 %684
  %686 = vrot.lane.b32.xlu0 %v507, 111
  %v687 = vpop.permute.xlu0 %686
  %v688 = vsel %vm235, %v685, %v687
  %v689 = vsel %vm235, %v683, %v685
  %v690 = vsel %vm235, %v681, %v683
  %v691 = vsel %vm235, %v687, %v681
  %v692 = vld [vmem:[%s2 + $0x100] sm:$0xff]
  %v693 = vld [vmem:[%s2 + $0x108] sm:$0xff]
  %v694 = vld [vmem:[%s2 + $0x110] sm:$0xff]
  %v695 = vld [vmem:[%s2 + $0x118] sm:$0xff]
  %v696 = vmul.f32 %v690, %v692
  %v697 = vmul.f32 %v689, %v693
  %v698 = vmul.f32 %v688, %v694
  %v699 = vmul.f32 %v691, %v695
  %700 = vst [vmem:[#allocation2 + $0x100] sm:$0xff] %v696
  %701 = vst [vmem:[#allocation2 + $0x108] sm:$0xff] %v697
  %702 = vst [vmem:[#allocation2 + $0x110] sm:$0xff] %v698
  %703 = vst [vmem:[#allocation2 + $0x118] sm:$0xff] %v699
  %s704 = scalar_lea.vmem %s1, 8
  %v705 = vld [vmem:[%s704] sm:$0xff]
  %v706 = vld [vmem:[#allocation2] sm:$0xff]
  %v707 = vld [vmem:[#allocation2 + $0x8] sm:$0xff]
  %v708 = vld [vmem:[#allocation2 + $0x10] sm:$0xff]
  %v709 = vld [vmem:[#allocation2 + $0x18] sm:$0xff]
  %v710 = vld [vmem:[#allocation2 + $0x20] sm:$0xff]
  %v711 = vld [vmem:[#allocation2 + $0x28] sm:$0xff]
  %v712 = vld [vmem:[#allocation2 + $0x30] sm:$0xff]
  %v713 = vld [vmem:[#allocation2 + $0x38] sm:$0xff]
  %v714 = vld [vmem:[#allocation2 + $0x40] sm:$0xff]
  %v715 = vld [vmem:[#allocation2 + $0x48] sm:$0xff]
  %v716 = vld [vmem:[#allocation2 + $0x50] sm:$0xff]
  %v717 = vld [vmem:[#allocation2 + $0x58] sm:$0xff]
  %v718 = vld [vmem:[#allocation2 + $0x60] sm:$0xff]
  %v719 = vld [vmem:[#allocation2 + $0x68] sm:$0xff]
  %v720 = vld [vmem:[#allocation2 + $0x70] sm:$0xff]
  %v721 = vld [vmem:[#allocation2 + $0x78] sm:$0xff]
  %v722 = vld [vmem:[#allocation2 + $0x80] sm:$0xff]
  %v723 = vld [vmem:[#allocation2 + $0x88] sm:$0xff]
  %v724 = vld [vmem:[#allocation2 + $0x90] sm:$0xff]
  %v725 = vld [vmem:[#allocation2 + $0x98] sm:$0xff]
  %v726 = vld [vmem:[#allocation2 + $0xa0] sm:$0xff]
  %v727 = vld [vmem:[#allocation2 + $0xa8] sm:$0xff]
  %v728 = vld [vmem:[#allocation2 + $0xb0] sm:$0xff]
  %v729 = vld [vmem:[#allocation2 + $0xb8] sm:$0xff]
  %v730 = vld [vmem:[#allocation2 + $0xc0] sm:$0xff]
  %v731 = vld [vmem:[#allocation2 + $0xc8] sm:$0xff]
  %v732 = vld [vmem:[#allocation2 + $0xd0] sm:$0xff]
  %v733 = vld [vmem:[#allocation2 + $0xd8] sm:$0xff]
  %v734 = vld [vmem:[#allocation2 + $0xe0] sm:$0xff]
  %v735 = vld [vmem:[#allocation2 + $0xe8] sm:$0xff]
  %v736 = vld [vmem:[#allocation2 + $0xf0] sm:$0xff]
  %v737 = vld [vmem:[#allocation2 + $0xf8] sm:$0xff]
  %v738 = vld [vmem:[#allocation2 + $0x100] sm:$0xff]
  %v739 = vld [vmem:[#allocation2 + $0x108] sm:$0xff]
  %v740 = vld [vmem:[#allocation2 + $0x110] sm:$0xff]
  %v741 = vld [vmem:[#allocation2 + $0x118] sm:$0xff]
  %v742 = vld [vmem:[#allocation2 + $0x120] sm:$0xff]
  %v743 = vld [vmem:[#allocation2 + $0x128] sm:$0xff]
  %v744 = vld [vmem:[#allocation2 + $0x130] sm:$0xff]
  %v745 = vld [vmem:[#allocation2 + $0x138] sm:$0xff]
  %v746 = vld [vmem:[#allocation2 + $0x140] sm:$0xff]
  %v747 = vld [vmem:[#allocation2 + $0x148] sm:$0xff]
  %v748 = vld [vmem:[#allocation2 + $0x150] sm:$0xff]
  %v749 = vld [vmem:[#allocation2 + $0x158] sm:$0xff]
  %v750 = vld [vmem:[#allocation2 + $0x160] sm:$0xff]
  %v751 = vld [vmem:[#allocation2 + $0x168] sm:$0xff]
  %v752 = vld [vmem:[#allocation2 + $0x170] sm:$0xff]
  %v753 = vld [vmem:[#allocation2 + $0x178] sm:$0xff]
  %v754 = vld [vmem:[#allocation2 + $0x180] sm:$0xff]
  %v755 = vld [vmem:[#allocation2 + $0x188] sm:$0xff]
  %v756 = vld [vmem:[#allocation2 + $0x190] sm:$0xff]
  %v757 = vld [vmem:[#allocation2 + $0x198] sm:$0xff]
  %v758 = vld [vmem:[#allocation2 + $0x1a0] sm:$0xff]
  %v759 = vld [vmem:[#allocation2 + $0x1a8] sm:$0xff]
  %v760 = vld [vmem:[#allocation2 + $0x1b0] sm:$0xff]
  %v761 = vld [vmem:[#allocation2 + $0x1b8] sm:$0xff]
  %v762 = vld [vmem:[#allocation2 + $0x1c0] sm:$0xff]
  %v763 = vld [vmem:[#allocation2 + $0x1c8] sm:$0xff]
  %v764 = vld [vmem:[#allocation2 + $0x1d0] sm:$0xff]
  %v765 = vld [vmem:[#allocation2 + $0x1d8] sm:$0xff]
  %v766 = vld [vmem:[#allocation2 + $0x1e0] sm:$0xff]
  %v767 = vld [vmem:[#allocation2 + $0x1e8] sm:$0xff]
  %v768 = vld [vmem:[#allocation2 + $0x1f0] sm:$0xff]
  %v769 = vld [vmem:[#allocation2 + $0x1f8] sm:$0xff]
  %770 = vmatprep.subr.mxu0 %v767
  %771 = vmatpush1.msra.mxu0 %v766
  %772 = vmatprep.subr.mxu0 %v763
  %773 = vmatpush1.msra.mxu0 %v762
  %774 = vmatprep.subr.mxu0 %v759
  %775 = vmatpush1.msra.mxu0 %v758
  %776 = vmatprep.subr.mxu0 %v755
  %777 = vmatpush1.msra.mxu0 %v754
  %778 = vmatprep.subr.mxu0 %v751
  %779 = vmatpush1.msra.mxu0 %v750
  %780 = vmatprep.subr.mxu0 %v747
  %781 = vmatpush1.msra.mxu0 %v746
  %782 = vmatprep.subr.mxu0 %v743
  %783 = vmatpush1.msra.mxu0 %v742
  %784 = vmatprep.subr.mxu0 %v739
  %785 = vmatpush1.msra.mxu0 %v738
  %786 = vmatprep.subr.mxu0 %v735
  %787 = vmatpush1.msra.mxu0 %v734
  %788 = vmatprep.subr.mxu0 %v731
  %789 = vmatpush1.msra.mxu0 %v730
  %790 = vmatprep.subr.mxu0 %v727
  %791 = vmatpush1.msra.mxu0 %v726
  %792 = vmatprep.subr.mxu0 %v723
  %793 = vmatpush1.msra.mxu0 %v722
  %794 = vmatprep.subr.mxu0 %v719
  %795 = vmatpush1.msra.mxu0 %v718
  %796 = vmatprep.subr.mxu0 %v715
  %797 = vmatpush1.msra.mxu0 %v714
  %798 = vmatprep.subr.mxu0 %v711
  %799 = vmatpush1.msra.mxu0 %v710
  %800 = vmatprep.subr.mxu0 %v707
  %801 = vmatpush1.msra.mxu0 %v706
  %802 = vmatprep.subr.mxu0 0.0
  %803 = vmatpush2.msra.mxu0 0.0
  %804 = vmatprep.subr.mxu0 0.0
  %805 = vmatpush2.msra.mxu0 0.0
  %806 = vmatprep.subr.mxu0 0.0
  %807 = vmatpush2.msra.mxu0 0.0
  %808 = vmatprep.subr.mxu0 0.0
  %809 = vmatpush2.msra.mxu0 0.0
  %810 = vmatprep.subr.mxu0 0.0
  %811 = vmatpush2.msra.mxu0 0.0
  %812 = vmatprep.subr.mxu0 0.0
  %813 = vmatpush2.msra.mxu0 0.0
  %814 = vmatprep.subr.mxu0 0.0
  %815 = vmatpush2.msra.mxu0 0.0
  %816 = vmatprep.subr.mxu0 0.0
  %817 = vmatpush2.msra.mxu0 0.0
  %818 = vmatprep.subr.mxu0 0.0
  %819 = vmatpush2.msra.mxu0 0.0
  %820 = vmatprep.subr.mxu0 0.0
  %821 = vmatpush2.msra.mxu0 0.0
  %822 = vmatprep.subr.mxu0 0.0
  %823 = vmatpush2.msra.mxu0 0.0
  %824 = vmatprep.subr.mxu0 0.0
  %825 = vmatpush2.msra.mxu0 0.0
  %826 = vmatprep.subr.mxu0 0.0
  %827 = vmatpush2.msra.mxu0 0.0
  %828 = vmatprep.subr.mxu0 0.0
  %829 = vmatpush2.msra.mxu0 0.0
  %830 = vmatprep.subr.mxu0 0.0
  %831 = vmatpush2.msra.mxu0 0.0
  %832 = vmatprep.subr.mxu0 0.0
  %833 = vmatpush2.msra.mxu0 0.0
  %834 = vmatprep.mubr.f32.mxu0 0.0
  %835 = vmatmul.mubr.f32.gmra.mxu0 %v705
  %v836 = vpop.f32.mrf.mxu0
  %v837 = vadd.f32 0.0, %v836
  %v838 = vpop.f32.mrf.mxu0
  %v839 = vadd.f32 0.0, %v838
  %840 = vdwg.mxu0
  %841 = vmatprep.subr.mxu0 %v769
  %842 = vmatpush1.msra.mxu0 %v768
  %843 = vmatprep.subr.mxu0 %v765
  %844 = vmatpush1.msra.mxu0 %v764
  %845 = vmatprep.subr.mxu0 %v761
  %846 = vmatpush1.msra.mxu0 %v760
  %847 = vmatprep.subr.mxu0 %v757
  %848 = vmatpush1.msra.mxu0 %v756
  %849 = vmatprep.subr.mxu0 %v753
  %850 = vmatpush1.msra.mxu0 %v752
  %851 = vmatprep.subr.mxu0 %v749
  %852 = vmatpush1.msra.mxu0 %v748
  %853 = vmatprep.subr.mxu0 %v745
  %854 = vmatpush1.msra.mxu0 %v744
  %855 = vmatprep.subr.mxu0 %v741
  %856 = vmatpush1.msra.mxu0 %v740
  %857 = vmatprep.subr.mxu0 %v737
  %858 = vmatpush1.msra.mxu0 %v736
  %859 = vmatprep.subr.mxu0 %v733
  %860 = vmatpush1.msra.mxu0 %v732
  %861 = vmatprep.subr.mxu0 %v729
  %862 = vmatpush1.msra.mxu0 %v728
  %863 = vmatprep.subr.mxu0 %v725
  %864 = vmatpush1.msra.mxu0 %v724
  %865 = vmatprep.subr.mxu0 %v721
  %866 = vmatpush1.msra.mxu0 %v720
  %867 = vmatprep.subr.mxu0 %v717
  %868 = vmatpush1.msra.mxu0 %v716
  %869 = vmatprep.subr.mxu0 %v713
  %870 = vmatpush1.msra.mxu0 %v712
  %871 = vmatprep.subr.mxu0 %v709
  %872 = vmatpush1.msra.mxu0 %v708
  %873 = vmatprep.subr.mxu0 0.0
  %874 = vmatpush2.msra.mxu0 0.0
  %875 = vmatprep.subr.mxu0 0.0
  %876 = vmatpush2.msra.mxu0 0.0
  %877 = vmatprep.subr.mxu0 0.0
  %878 = vmatpush2.msra.mxu0 0.0
  %879 = vmatprep.subr.mxu0 0.0
  %880 = vmatpush2.msra.mxu0 0.0
  %881 = vmatprep.subr.mxu0 0.0
  %882 = vmatpush2.msra.mxu0 0.0
  %883 = vmatprep.subr.mxu0 0.0
  %884 = vmatpush2.msra.mxu0 0.0
  %885 = vmatprep.subr.mxu0 0.0
  %886 = vmatpush2.msra.mxu0 0.0
  %887 = vmatprep.subr.mxu0 0.0
  %888 = vmatpush2.msra.mxu0 0.0
  %889 = vmatprep.subr.mxu0 0.0
  %890 = vmatpush2.msra.mxu0 0.0
  %891 = vmatprep.subr.mxu0 0.0
  %892 = vmatpush2.msra.mxu0 0.0
  %893 = vmatprep.subr.mxu0 0.0
  %894 = vmatpush2.msra.mxu0 0.0
  %895 = vmatprep.subr.mxu0 0.0
  %896 = vmatpush2.msra.mxu0 0.0
  %897 = vmatprep.subr.mxu0 0.0
  %898 = vmatpush2.msra.mxu0 0.0
  %899 = vmatprep.subr.mxu0 0.0
  %900 = vmatpush2.msra.mxu0 0.0
  %901 = vmatprep.subr.mxu0 0.0
  %902 = vmatpush2.msra.mxu0 0.0
  %903 = vmatprep.subr.mxu0 0.0
  %904 = vmatpush2.msra.mxu0 0.0
  %905 = vmatprep.mubr.f32.mxu0 0.0
  %906 = vmatmul.mubr.f32.gmra.mxu0 %v705
  %v907 = vpop.f32.mrf.mxu0
  %v908 = vadd.f32 0.0, %v907
  %v909 = vpop.f32.mrf.mxu0
  %v910 = vadd.f32 0.0, %v909
  %911 = vdwg.mxu0
  %v912 = vmul.f32 %v837, %v837
  %v913 = vmul.f32 %v839, %v839
  %v914 = vmul.f32 %v908, %v908
  %v915 = vmul.f32 %v910, %v910
  %v916 = vadd.f32 %v837, %v839
  %v917 = vadd.f32 %v916, %v908
  %v918 = vadd.f32 %v917, %v910
  %919 = vadd.xlane.f32.xlu0 %v918
  %v920 = vpop.xlane.xlu0 %919
  %v921 = vadd.f32 %v912, %v913
  %v922 = vadd.f32 %v921, %v914
  %v923 = vadd.f32 %v922, %v915
  %924 = vadd.xlane.f32.xlu0 %v923
  %v925 = vpop.xlane.xlu0 %924
  %v926 = vmul.f32 %v920, 0.001953125
  %v927 = vmul.f32 %v925, 0.001953125
  %v928 = vmul.f32 %v926, %v926
  %v929 = vsub.f32 %v927, %v928
  %v930 = vadd.f32 %v929, 1e-05
  %v931 = vrsqrt.pop %v930
  %v932 = vmul.f32 %v705, %v931
  %v933 = vmul.f32 %v926, %v932
  %935 = vrot.lane.b32.xlu0 %v933, 1
  %v936 = vpop.permute.xlu0 %935
  %v938 = vsub.f32 %v705, %v936
  %940 = vset.pattern.permute.xlu0 72
  %941 = vperm.xlu0 %940, %v932
  %v942 = vpop.permute.xlu0 %941
  %v944 = vmul.f32 %v837, %v942
  %v945 = vmul.f32 %v839, %v942
  %v946 = vmul.f32 %v908, %v942
  %v947 = vmul.f32 %v910, %v942
  %949 = vset.pattern.permute.xlu0 73
  %950 = vperm.xlu0 %949, %v938
  %v951 = vpop.permute.xlu0 %950
  %v953 = vadd.f32 %v944, %v951
  %v954 = vadd.f32 %v945, %v951
  %v955 = vadd.f32 %v946, %v951
  %v956 = vadd.f32 %v947, %v951
  %v957 = vadd.f32 %v953, %v42
  %v958 = vadd.f32 %v954, %v43
  %v959 = vadd.f32 %v955, %v44
  %v960 = vadd.f32 %v956, %v45
  %v961 = vmax.f32 %v957, 0.0
  %v962 = vmax.f32 %v958, 0.0
  %v963 = vmax.f32 %v959, 0.0
  %v964 = vmax.f32 %v960, 0.0
  %965 = vst [vmem:[%s3] sm:$0xff] %v961
  %966 = vst [vmem:[%s3 + $0x8] sm:$0xff] %v962
  %967 = vst [vmem:[%s3 + $0x10] sm:$0xff] %v963
  %968 = vst [vmem:[%s3 + $0x18] sm:$0xff] %v964
  // Predicated region
  $region14: #{residual_forward.1} parent=0 // pred_check
    _
  $region15: #{residual_forward.1} parent=0 // pred_check_branch
    %970 = sbr.rel (0) target = $region17
  $region16: #{residual_forward.1} parent=0 // pred_region
    _
  $region17: #{residual_forward.1} parent=0 // pred_fallthru
    _
  // Predicated region
  $region18: #{residual_forward.1} parent=0 // pred_check
    _
  $region19: #{residual_forward.1} parent=0 // pred_check_branch
    %972 = sbr.rel (0) target = $region21
  $region20: #{residual_forward.1} parent=0 // pred_region
    _
  $region21: #{residual_forward.1} parent=0 // pred_fallthru
    _

</llo_original>
